<compile_context>
chip_gen: v5e
topology: v5e:2x2
jax: 0.10.0
libtpu: 0.0.40
codegen_flags: <defaults>
</compile_context>

<pallas_src>
import jax
import jax.numpy as jnp
from jax.experimental import pallas as pl
from jax.experimental.pallas import tpu as pltpu


def _round_up(x, m):
    return ((x + m - 1) // m) * m


def duel_kernel(x_ref, w_ref, m_ref, o_ref):
    # One fused MXU pass: columns [0] -> ReLU(x @ W1), columns [1:9] -> ReLU(x @ W2).
    y = jnp.maximum(
        jnp.dot(x_ref[...], w_ref[...], preferred_element_type=jnp.float32), 0.0
    )  # (tile_n, 9)
    # Dueling combine as a constant matmul:
    #   M[0, j] = 1 ; M[1+i, j] = delta_ij - 1/8  =>  (y @ M)[:, j] = a + b_j - mean(b)
    o_ref[...] = jnp.dot(
        y, m_ref[...], preferred_element_type=jnp.float32
    ).astype(o_ref.dtype)


def duel_layer(x, w1, w2, *, tile_n=8192):
    """x: (N, ch_q) f32, w1: (ch_q, 1) f32, w2: (ch_q, 8) f32 -> (N, 8) f32."""
    N, ch_q = x.shape
    assert w1.shape == (ch_q, 1) and w2.shape == (ch_q, 8)

    # Fuse the two Linear weights into a single (ch_q, 9) matrix.
    w_cat = jnp.concatenate([w1, w2], axis=1).astype(jnp.float32)

    # Constant combine matrix: row 0 = ones (value stream), rows 1..8 = I - 1/8
    # (advantage stream minus its mean).
    combine = jnp.concatenate(
        [jnp.ones((1, 8), jnp.float32),
         jnp.eye(8, dtype=jnp.float32) - jnp.float32(1.0 / 8.0)],
        axis=0,
    )  # (9, 8)

    # Tile over N; pad the tail so every block is full (padded rows are zeros,
    # compute row-wise independently, and are sliced off afterwards).
    tile = min(tile_n, _round_up(N, 8))
    n_pad = _round_up(N, tile)
    x_p = x if n_pad == N else jnp.pad(x, ((0, n_pad - N), (0, 0)))
    grid = (n_pad // tile,)

    out = pl.pallas_call(
        duel_kernel,
        out_shape=jax.ShapeDtypeStruct((n_pad, 8), jnp.float32),
        grid=grid,
        in_specs=[
            pl.BlockSpec((tile, ch_q), lambda i: (i, 0)),   # streamed row tiles of x
            pl.BlockSpec((ch_q, 9), lambda i: (0, 0)),      # fused weight, resident
            pl.BlockSpec((9, 8), lambda i: (0, 0)),         # combine matrix, resident
        ],
        out_specs=pl.BlockSpec((tile, 8), lambda i: (i, 0)),
        compiler_params=pltpu.CompilerParams(
            dimension_semantics=("parallel",),               # lets v7x use both TCs
        ),
        cost_estimate=pl.CostEstimate(
            flops=2 * n_pad * ch_q * 9 + 2 * n_pad * 9 * 8,
            bytes_accessed=n_pad * (ch_q + 8) * 4 + (ch_q * 9 + 9 * 8) * 4,
            transcendentals=0,
        ),
    )(x_p, w_cat, combine)

    return out[:N]


def _reference(x, w1, w2):
    a = jnp.maximum(x @ w1, 0.0)
    b = jnp.maximum(x @ w2, 0.0)
    return a + (b - jnp.mean(b, axis=1, keepdims=True))


if __name__ == "__main__":
    key = jax.random.PRNGKey(0)
    k_x, k_w1, k_w2, k_x2 = jax.random.split(key, 4)

    N = 32          # batch of state-action feature rows (shipped shape)
    ch_q = 16       # args.ch_q

    x = jax.random.normal(k_x, (N, ch_q), dtype=jnp.float32)
    bound = 1.0 / jnp.sqrt(ch_q)
    w1 = jax.random.uniform(k_w1, (ch_q, 1), jnp.float32, -bound, bound)
    w2 = jax.random.uniform(k_w2, (ch_q, 8), jnp.float32, -bound, bound)

    out = duel_layer(x, w1, w2)
    out = jax.block_until_ready(out)
    assert out.shape == (N, 8)
    assert jnp.allclose(out, _reference(x, w1, w2), atol=1e-5, rtol=1e-5), \
        "mismatch vs reference (N=32)"

    # Second check: exercise grid > 1 and a ragged tail (N not a multiple of the tile).
    N2 = 1000
    x2 = jax.random.normal(k_x2, (N2, ch_q), dtype=jnp.float32)
    out2 = jax.block_until_ready(duel_layer(x2, w1, w2, tile_n=256))
    assert out2.shape == (N2, 8)
    assert jnp.allclose(out2, _reference(x2, w1, w2), atol=1e-5, rtol=1e-5), \
        "mismatch vs reference (tiled N=1000)"

    print("KERNEL_OK")
</pallas_src>

<mosaic_0001>
module attributes {stable_mosaic.version = 11 : i64} {
  func.func @duel_kernel(%arg0: i32, %arg1: memref<32x16xf32, #tpu.memory_space<vmem>>, %arg2: memref<16x9xf32, #tpu.memory_space<vmem>>, %arg3: memref<9x8xf32, #tpu.memory_space<vmem>>, %arg4: memref<32x8xf32, #tpu.memory_space<vmem>>) attributes {dimension_semantics = [#tpu.dimension_semantics<parallel>], iteration_bounds = array<i64: 1>, scalar_prefetch = 0 : i64, scratch_operands = 0 : i64, tpu.core_type = #tpu.core_type<tc>, window_params = [{transform_indices = @transform_0, window_bounds = array<i64: 32, 16>}, {pipeline_mode = #tpu.pipeline_mode<synchronous>, transform_indices = @transform_1, window_bounds = array<i64: 16, 9>}, {pipeline_mode = #tpu.pipeline_mode<synchronous>, transform_indices = @transform_2, window_bounds = array<i64: 9, 8>}, {transform_indices = @transform_3, window_bounds = array<i64: 32, 8>}]} {
    %c0 = arith.constant 0 : index
    %c0_0 = arith.constant 0 : index
    %0 = vector.load %arg1[%c0, %c0_0] : memref<32x16xf32, #tpu.memory_space<vmem>>, vector<32x16xf32>
    %c0_1 = arith.constant 0 : index
    %c0_2 = arith.constant 0 : index
    %1 = vector.load %arg2[%c0_1, %c0_2] : memref<16x9xf32, #tpu.memory_space<vmem>>, vector<16x9xf32>
    %cst = arith.constant dense<0.000000e+00> : vector<32x9xf32>
    %2 = tpu.matmul %0, %1, %cst {dimension_numbers = #tpu.dot_dimension_numbers<[1], [0], [0], [1], [0, 0, 1, 1], [], []>} : vector<32x16xf32>, vector<16x9xf32>, vector<32x9xf32> -> vector<32x9xf32>
    %cst_3 = arith.constant 0.000000e+00 : f32
    %3 = vector.broadcast %cst_3 : f32 to vector<32x9xf32>
    %4 = arith.maximumf %2, %3 : vector<32x9xf32>
    %c0_4 = arith.constant 0 : index
    %c0_5 = arith.constant 0 : index
    %5 = vector.load %arg3[%c0_4, %c0_5] : memref<9x8xf32, #tpu.memory_space<vmem>>, vector<9x8xf32>
    %cst_6 = arith.constant dense<0.000000e+00> : vector<32x8xf32>
    %6 = tpu.matmul %4, %5, %cst_6 {dimension_numbers = #tpu.dot_dimension_numbers<[1], [0], [0], [1], [0, 0, 1, 1], [], []>} : vector<32x9xf32>, vector<9x8xf32>, vector<32x8xf32> -> vector<32x8xf32>
    %c0_7 = arith.constant 0 : index
    %c0_8 = arith.constant 0 : index
    %7 = vector.load %arg4[%c0_7, %c0_8] : memref<32x8xf32, #tpu.memory_space<vmem>>, vector<32x8xf32>
    tpu.vector_store %arg4[%c0_7, %c0_8], %6 {strides = array<i32>} : memref<32x8xf32, #tpu.memory_space<vmem>>, vector<32x8xf32>,
    return
  }
  func.func @transform_0(%arg0: i32) -> (i32, i32) {
    %c0_i32 = arith.constant 0 : i32
    %c0_i32_0 = arith.constant 0 : i32
    return %arg0, %c0_i32 : i32, i32
  }
  func.func @transform_1(%arg0: i32) -> (i32, i32) {
    %c0_i32 = arith.constant 0 : i32
    %c0_i32_0 = arith.constant 0 : i32
    %c0_i32_1 = arith.constant 0 : i32
    return %c0_i32, %c0_i32_0 : i32, i32
  }
  func.func @transform_2(%arg0: i32) -> (i32, i32) {
    %c0_i32 = arith.constant 0 : i32
    %c0_i32_0 = arith.constant 0 : i32
    %c0_i32_1 = arith.constant 0 : i32
    return %c0_i32, %c0_i32_0 : i32, i32
  }
  func.func @transform_3(%arg0: i32) -> (i32, i32) {
    %c0_i32 = arith.constant 0 : i32
    %c0_i32_0 = arith.constant 0 : i32
    return %arg0, %c0_i32 : i32, i32
  }
}

</mosaic_0001>

<llo_original>
// kernel: tpu_custom_call.1
$region0: #{tpu_custom_call.1}
  #allocation0 [shape = 'u32[]', space=smem, size = 0x4, offset = 0x4, fixed_abs, tag = 'smem constant byte address 0x4 - core index']
  #allocation1 [shape = 'u32[72,128]{1,0:T(1,128)}', space=vmem, size = 0x9000, scoped, tag = 'internal scratch']
  %s0 = inlined_call_operand.vmem [shape: f32[32,16], index: 0, kind: input, shape index: {}]
  %s1 = inlined_call_operand.vmem [shape: f32[16,9], index: 1, kind: input, shape index: {}]
  %s2 = inlined_call_operand.vmem [shape: f32[9,8], index: 2, kind: input, shape index: {}]
  %s3 = inlined_call_operand.vmem [shape: f32[32,8], index: 3, kind: output, shape index: {}]
  %s4 = sld [smem:[#allocation0]]
  $region22: #{tpu_custom_call.1} parent=0
    _
  %s6 = ssub.s32 1, %s4
  %s7 = scalar_select 0, %s6, %s4
  // Predicated region
  $region2: #{tpu_custom_call.1} parent=0 // pred_check
    _
  $region3: #{tpu_custom_call.1} parent=0 // pred_check_branch
    %9 = sbr.rel (0) target = $region5
  $region4: #{tpu_custom_call.1} parent=0 // pred_region
    _
  $region5: #{tpu_custom_call.1} parent=0 // pred_fallthru
    _
  // Predicated region
  $region6: #{tpu_custom_call.1} parent=0 // pred_check
    _
  $region7: #{tpu_custom_call.1} parent=0 // pred_check_branch
    %11 = sbr.rel (0) target = $region9
  $region8: #{tpu_custom_call.1} parent=0 // pred_region
    _
  $region9: #{tpu_custom_call.1} parent=0 // pred_fallthru
    _
  // Predicated region
  $region10: #{tpu_custom_call.1} parent=0 // pred_check
    _
  $region11: #{tpu_custom_call.1} parent=0 // pred_check_branch
    %13 = sbr.rel (0) target = $region13
  $region12: #{tpu_custom_call.1} parent=0 // pred_region
    _
  $region13: #{tpu_custom_call.1} parent=0 // pred_fallthru
    _
  %v14 = vld [vmem:[%s0] sm:$0xff]
  %v15 = vld [vmem:[%s0 + $0x8] sm:$0xff]
  %v16 = vld [vmem:[%s0 + $0x10] sm:$0xff]
  %v17 = vld [vmem:[%s0 + $0x18] sm:$0xff]
  %v18 = vld [vmem:[%s1] sm:$0xff]
  %v19 = vld [vmem:[%s1 + $0x8] sm:$0xff]
  %vm20 = vcmask 130048
  %v22 = vsel %vm20, %v14, 0
  %v25 = vsel %vm20, %v15, 0
  %v28 = vsel %vm20, %v16, 0
  %v31 = vsel %vm20, %v17, 0
  %33 = vmatpush.msra.mxu0 0.0
  %34 = vmatpush.msra.mxu0 0.0
  %35 = vmatpush.msra.mxu0 0.0
  %36 = vmatpush.msra.mxu0 0.0
  %37 = vmatpush.msra.mxu0 0.0
  %38 = vmatpush.msra.mxu0 0.0
  %39 = vmatpush.msra.mxu0 0.0
  %40 = vmatpush.msra.mxu0 0.0
  %41 = vmatpush.msra.mxu0 0.0
  %42 = vmatpush.msra.mxu0 0.0
  %43 = vmatpush.msra.mxu0 0.0
  %44 = vmatpush.msra.mxu0 0.0
  %45 = vmatpush.msra.mxu0 0.0
  %46 = vmatpush.msra.mxu0 0.0
  %47 = vmatpush.msra.mxu0 %v19
  %48 = vmatpush.msra.mxu0 %v18
  %49 = vmatmul.f32.gmra.mxu0 %v22
  %v50 = vpop.f32.mrf.mxu0
  %v51 = vadd.f32 0.0, %v50
  %52 = vmatmul.f32.gmra.mxu0 %v25
  %v53 = vpop.f32.mrf.mxu0
  %v54 = vadd.f32 0.0, %v53
  %55 = vmatmul.f32.gmra.mxu0 %v28
  %v56 = vpop.f32.mrf.mxu0
  %v57 = vadd.f32 0.0, %v56
  %58 = vmatmul.f32.gmra.mxu0 %v31
  %v59 = vpop.f32.mrf.mxu0
  %v60 = vadd.f32 0.0, %v59
  %61 = vdwg.mxu0
  %v62 = vmax.f32 %v51, 0.0
  %v63 = vmax.f32 %v54, 0.0
  %v64 = vmax.f32 %v57, 0.0
  %v65 = vmax.f32 %v60, 0.0
  %v66 = vld [vmem:[%s2] sm:$0xff]
  %v67 = vld [vmem:[%s2 + $0x8] sm:$0x1]
  %vm68 = vcmask 72704
  %v70 = vsel %vm68, %v62, 0
  %v73 = vsel %vm68, %v63, 0
  %v76 = vsel %vm68, %v64, 0
  %v79 = vsel %vm68, %v65, 0
  %vm81 = vcmask 1040384
  %v83 = vsel %vm81, %v67, 0
  %85 = vmatpush.msra.mxu0 0.0
  %86 = vmatpush.msra.mxu0 0.0
  %87 = vmatpush.msra.mxu0 0.0
  %88 = vmatpush.msra.mxu0 0.0
  %89 = vmatpush.msra.mxu0 0.0
  %90 = vmatpush.msra.mxu0 0.0
  %91 = vmatpush.msra.mxu0 0.0
  %92 = vmatpush.msra.mxu0 0.0
  %93 = vmatpush.msra.mxu0 0.0
  %94 = vmatpush.msra.mxu0 0.0
  %95 = vmatpush.msra.mxu0 0.0
  %96 = vmatpush.msra.mxu0 0.0
  %97 = vmatpush.msra.mxu0 0.0
  %98 = vmatpush.msra.mxu0 0.0
  %99 = vmatpush.msra.mxu0 %v83
  %100 = vmatpush.msra.mxu0 %v66
  %101 = vmatmul.f32.gmra.mxu0 %v70
  %v102 = vpop.f32.mrf.mxu0
  %v103 = vadd.f32 0.0, %v102
  %104 = vmatmul.f32.gmra.mxu0 %v73
  %v105 = vpop.f32.mrf.mxu0
  %v106 = vadd.f32 0.0, %v105
  %107 = vmatmul.f32.gmra.mxu0 %v76
  %v108 = vpop.f32.mrf.mxu0
  %v109 = vadd.f32 0.0, %v108
  %110 = vmatmul.f32.gmra.mxu0 %v79
  %v111 = vpop.f32.mrf.mxu0
  %v112 = vadd.f32 0.0, %v111
  %113 = vdwg.mxu0
  %vm114 = vcmask 64512
  %115 = vst.msk [vmem:[%s3] sm:$0xff] %vm114, %v103
  %116 = vst.msk [vmem:[%s3 + $0x8] sm:$0xff] %vm114, %v106
  %117 = vst.msk [vmem:[%s3 + $0x10] sm:$0xff] %vm114, %v109
  %118 = vst.msk [vmem:[%s3 + $0x18] sm:$0xff] %vm114, %v112
  // Predicated region
  $region14: #{tpu_custom_call.1} parent=0 // pred_check
    _
  $region15: #{tpu_custom_call.1} parent=0 // pred_check_branch
    %120 = sbr.rel (0) target = $region17
  $region16: #{tpu_custom_call.1} parent=0 // pred_region
    _
  $region17: #{tpu_custom_call.1} parent=0 // pred_fallthru
    _
  // Predicated region
  $region18: #{tpu_custom_call.1} parent=0 // pred_check
    _
  $region19: #{tpu_custom_call.1} parent=0 // pred_check_branch
    %122 = sbr.rel (0) target = $region21
  $region20: #{tpu_custom_call.1} parent=0 // pred_region
    _
  $region21: #{tpu_custom_call.1} parent=0 // pred_fallthru
    _

</llo_original>
